<compile_context>
chip_gen: v5e
topology: v5e:2x2
jax: 0.10.0
libtpu: 0.0.40
codegen_flags: <defaults>
</compile_context>

<pallas_src>
import jax
import jax.numpy as jnp
from jax import lax
from jax.experimental import pallas as pl
from jax.experimental.pallas import tpu as pltpu

LANES = 128
CHUNK = 8 * LANES                 # 1024 elements = one (8,128) f32 vreg tile
MAX_TILE_BYTES = 4 * 1024 * 1024  # ~4 MiB of input per grid step per buffer


def _make_kernel(row_tile, rows_valid, tiles_per_core, needs_mask):
    """Build the kernel with static tiling constants closed over."""

    def kernel(x_ref, o_ref, acc_ref):
        t = pl.program_id(1)

        @pl.when(t == 0)
        def _init():
            acc_ref[...] = jnp.zeros_like(acc_ref)

        # Cast-on-load (no-op for f32, cheap for bf16 on the VPU).
        x = x_ref[...].astype(jnp.float32)
        d = x - 1.0
        contrib = d * d  # the /2 is folded into the final scale in the wrapper

        def _accum(vals):
            # (row_tile,128)->(row_tile/8,8,128) is a layout-preserving view;
            # the axis-0 sum is pure elementwise vreg adds (VPU), no XLU.
            acc_ref[...] += vals.reshape(-1, 8, LANES).sum(axis=0)

        if needs_mask:
            c = pl.program_id(0)
            row_start = (c * tiles_per_core + t) * row_tile
            is_full = row_start + row_tile <= rows_valid

            @pl.when(is_full)
            def _fast():                       # full tiles: no mask cost
                _accum(contrib)

            @pl.when(jnp.logical_not(is_full))
            def _masked():                     # only the partial/overflow tiles
                row_idx = (
                    lax.broadcasted_iota(jnp.int32, contrib.shape, 0) + row_start
                )
                # jnp.where (not a 0/1 multiply): excludes garbage/NaN rows that
                # Pallas may have fetched past the end of the array.
                _accum(jnp.where(row_idx < rows_valid, contrib, 0.0))
        else:
            _accum(contrib)

        @pl.when(t == pl.num_programs(1) - 1)
        def _finalize():
            # Emit the per-core (8,128) partial slab; the (tiny) cross-lane
            # reduction and the 0.5/n scale happen in the wrapper.
            o_ref[...] = acc_ref[...].reshape(1, 8, LANES)

    return kernel


def generator_adversarial_loss(fake):
    """mean((fake - 1)**2 / 2) over all elements, computed in a Pallas TPU kernel."""
    orig_dtype = fake.dtype
    n = int(fake.size)
    if n == 0:
        # torch.mean of an empty tensor is NaN.
        return jnp.full((), jnp.nan, orig_dtype)

    # Flatten in the ORIGINAL dtype (no f32 copy through HBM).
    flat = jnp.ravel(fake)

    # The kernel consumes whole 1024-element (8x128) chunks; the <=1023-element
    # tail is handled with plain jnp below (zero extra HBM traffic when
    # n % 1024 == 0, the common case).
    n_main = (n // CHUNK) * CHUNK
    tail_n = n - n_main

    partial_sum = jnp.zeros((), jnp.float32)

    if n_main:
        rows = n_main // LANES  # always a multiple of 8
        # Identity slice (free) when n_main == n; otherwise a one-off copy on
        # the rare ragged-lane path.
        x2d = flat[:n_main].reshape(rows, LANES)

        itemsize = jnp.dtype(orig_dtype).itemsize
        max_row_tile = max(8, MAX_TILE_BYTES // (LANES * itemsize))  # mult. of 8
        row_tile = rows if rows <= max_row_tile else max_row_tile

        tiles_total = pl.cdiv(rows, row_tile)
        num_cores = min(2, tiles_total)          # 2-way split for v7x megacore
        tiles_per_core = pl.cdiv(tiles_total, num_cores)
        needs_mask = num_cores * tiles_per_core * row_tile > rows
        needs_clamp = num_cores * tiles_per_core > tiles_total

        def in_index_map(c, t):
            g = c * tiles_per_core + t
            if needs_clamp:
                # Overflow tiles re-fetch the last real block; the kernel masks
                # their contribution to exactly zero.
                g = jnp.minimum(g, tiles_total - 1)
            return (g, 0)

        kernel = _make_kernel(
            row_tile=row_tile,
            rows_valid=rows,
            tiles_per_core=tiles_per_core,
            needs_mask=needs_mask,
        )

        partials = pl.pallas_call(
            kernel,
            out_shape=jax.ShapeDtypeStruct((num_cores, 8, LANES), jnp.float32),
            grid_spec=pltpu.PrefetchScalarGridSpec(
                num_scalar_prefetch=0,
                grid=(num_cores, tiles_per_core),
                in_specs=[pl.BlockSpec((row_tile, LANES), in_index_map)],
                out_specs=pl.BlockSpec((1, 8, LANES), lambda c, t: (c, 0, 0)),
                scratch_shapes=[pltpu.VMEM((8, LANES), jnp.float32)],
            ),
            compiler_params=pltpu.CompilerParams(
                dimension_semantics=("parallel", "arbitrary"),
                vmem_limit_bytes=32 << 20,  # 2x4 MiB double buffer + 4 KiB acc
            ),
        )(x2d)
        partial_sum = partial_sum + jnp.sum(partials)

    if tail_n:
        # <=1023-element tail: negligible; computed with plain jnp.
        d = flat[n_main:].astype(jnp.float32) - 1.0
        partial_sum = partial_sum + jnp.sum(d * d)

    mean = partial_sum * (0.5 / n)   # /2 folded in here
    # torch.mean preserves the floating dtype of the input.
    return mean.astype(orig_dtype)


if __name__ == "__main__":
    key = jax.random.PRNGKey(0)
    fake = jax.random.normal(key, (2, 4, 16, 16), dtype=jnp.float32)

    loss_fn = jax.jit(generator_adversarial_loss)
    out = loss_fn(fake)
    out = jax.block_until_ready(out)

    # reference check (plain JAX)
    ref = jnp.mean((fake - 1.0) ** 2 / 2.0)
    assert jnp.allclose(out, ref, atol=1e-6, rtol=1e-6), (out, ref)

    print("KERNEL_OK")
</pallas_src>

<mosaic_0001>
module attributes {stable_mosaic.version = 11 : i64} {
  func.func @kernel(%arg0: i32, %arg1: i32, %arg2: memref<16x128xf32, #tpu.memory_space<vmem>>, %arg3: memref<1x8x128xf32, #tpu.memory_space<vmem>>, %arg4: memref<8x128xf32, #tpu.memory_space<vmem>>) attributes {dimension_semantics = [#tpu.dimension_semantics<parallel>, #tpu.dimension_semantics<arbitrary>], iteration_bounds = array<i64: 1, 1>, scalar_prefetch = 0 : i64, scratch_operands = 1 : i64, tpu.core_type = #tpu.core_type<tc>, window_params = [{transform_indices = @transform_0, window_bounds = array<i64: 16, 128>}, {transform_indices = @transform_1, window_bounds = array<i64: 1, 8, 128>}]} {
    %c0_i32 = arith.constant 0 : i32
    %0 = arith.cmpi eq, %arg1, %c0_i32 : i32
    %1 = arith.extui %0 : i1 to i32
    %c0_i32_0 = arith.constant 0 : i32
    %2 = arith.cmpi ne, %1, %c0_i32_0 : i32
    scf.if %2 {
      %cst_9 = arith.constant 0.000000e+00 : f32
      %15 = vector.broadcast %cst_9 : f32 to vector<8x128xf32>
      %c0_10 = arith.constant 0 : index
      %c0_11 = arith.constant 0 : index
      %16 = vector.load %arg4[%c0_10, %c0_11] : memref<8x128xf32, #tpu.memory_space<vmem>>, vector<8x128xf32>
      tpu.vector_store %arg4[%c0_10, %c0_11], %15 {strides = array<i32>} : memref<8x128xf32, #tpu.memory_space<vmem>>, vector<8x128xf32>,
    } else {
    }
    %c0 = arith.constant 0 : index
    %c0_1 = arith.constant 0 : index
    %3 = vector.load %arg2[%c0, %c0_1] : memref<16x128xf32, #tpu.memory_space<vmem>>, vector<16x128xf32>
    %cst = arith.constant 1.000000e+00 : f32
    %4 = vector.broadcast %cst : f32 to vector<16x128xf32>
    %5 = arith.subf %3, %4 : vector<16x128xf32>
    %6 = arith.mulf %5, %5 : vector<16x128xf32>
    %c0_2 = arith.constant 0 : index
    %c0_3 = arith.constant 0 : index
    %7 = vector.load %arg4[%c0_2, %c0_3] : memref<8x128xf32, #tpu.memory_space<vmem>>, vector<8x128xf32>
    %8 = vector.shape_cast %6 : vector<16x128xf32> to vector<2x8x128xf32>
    %cst_4 = arith.constant dense<0.000000e+00> : vector<8x128xf32>
    %9 = vector.multi_reduction <add>, %8, %cst_4 [0] : vector<2x8x128xf32> to vector<8x128xf32>
    %10 = arith.addf %7, %9 : vector<8x128xf32>
    %c0_5 = arith.constant 0 : index
    %c0_6 = arith.constant 0 : index
    %11 = vector.load %arg4[%c0_5, %c0_6] : memref<8x128xf32, #tpu.memory_space<vmem>>, vector<8x128xf32>
    tpu.vector_store %arg4[%c0_5, %c0_6], %10 {strides = array<i32>} : memref<8x128xf32, #tpu.memory_space<vmem>>, vector<8x128xf32>,
    %c0_i32_7 = arith.constant 0 : i32
    %12 = arith.cmpi eq, %arg1, %c0_i32_7 : i32
    %13 = arith.extui %12 : i1 to i32
    %c0_i32_8 = arith.constant 0 : i32
    %14 = arith.cmpi ne, %13, %c0_i32_8 : i32
    scf.if %14 {
      %c0_9 = arith.constant 0 : index
      %c0_10 = arith.constant 0 : index
      %15 = vector.load %arg4[%c0_9, %c0_10] : memref<8x128xf32, #tpu.memory_space<vmem>>, vector<8x128xf32>
      %16 = vector.shape_cast %15 : vector<8x128xf32> to vector<1x8x128xf32>
      %c0_11 = arith.constant 0 : index
      %c0_12 = arith.constant 0 : index
      %c0_13 = arith.constant 0 : index
      %17 = vector.load %arg3[%c0_11, %c0_12, %c0_13] : memref<1x8x128xf32, #tpu.memory_space<vmem>>, vector<1x8x128xf32>
      tpu.vector_store %arg3[%c0_11, %c0_12, %c0_13], %16 {strides = array<i32>} : memref<1x8x128xf32, #tpu.memory_space<vmem>>, vector<1x8x128xf32>,
    } else {
    }
    return
  }
  func.func @transform_0(%arg0: i32, %arg1: i32) -> (i32, i32) {
    %c1_i32 = arith.constant 1 : i32
    %0 = arith.muli %arg0, %c1_i32 : i32
    %1 = arith.addi %0, %arg1 : i32
    %c0_i32 = arith.constant 0 : i32
    %c0_i32_0 = arith.constant 0 : i32
    return %1, %c0_i32 : i32, i32
  }
  func.func @transform_1(%arg0: i32, %arg1: i32) -> (i32, i32, i32) {
    %c0_i32 = arith.constant 0 : i32
    %c0_i32_0 = arith.constant 0 : i32
    %c0_i32_1 = arith.constant 0 : i32
    return %arg0, %c0_i32, %c0_i32_0 : i32, i32, i32
  }
}

</mosaic_0001>

<llo_original>
// kernel: generator_adversarial_loss.1
$region0: #{generator_adversarial_loss.1}
  #allocation0 [shape = 'u32[]', space=smem, size = 0x4, offset = 0x4, fixed_abs, tag = 'smem constant byte address 0x4 - core index']
  #allocation1 [shape = 'u32[72,128]{1,0:T(1,128)}', space=vmem, size = 0x9000, scoped, tag = 'internal scratch']
  #allocation2 [shape = 'f32[8,128]{1,0:T(8,128)}', space=vmem, size = 0x1000, scoped, tag = 'scratch operand']
  %s0 = inlined_call_operand.vmem [shape: f32[16,128], index: 0, kind: input, shape index: {}]
  %s1 = inlined_call_operand.vmem [shape: f32[1,8,128], index: 1, kind: output, shape index: {}]
  %s2 = sld [smem:[#allocation0]]
  $region22: #{generator_adversarial_loss.1} parent=0
    _
  %s4 = ssub.s32 1, %s2
  %s5 = scalar_select 0, %s4, %s2
  // Predicated region
  $region2: #{generator_adversarial_loss.1} parent=0 // pred_check
    _
  $region3: #{generator_adversarial_loss.1} parent=0 // pred_check_branch
    %7 = sbr.rel (0) target = $region5
  $region4: #{generator_adversarial_loss.1} parent=0 // pred_region
    %s8 = sadd.s32 0, 0
    %s9 = smul.u32 2, %s8
    %p10 = scmp.lt.s32.totalorder %s9, 1
    %s11 = scalar_select %p10, %s9, 1
    %s12 = smul.addr %s11, 8
    %s13 = scalar_lea.vmem %s0, %s12
    %s14 = sadd.s32 0, 0
    %s15 = smul.u32 2, %s14
  $region5: #{generator_adversarial_loss.1} parent=0 // pred_fallthru
    _
  %s16 = sadd.s32 0, 0
  %s17 = smul.u32 2, %s16
  %p18 = scmp.lt.s32.totalorder %s17, 1
  %s19 = scalar_select %p18, %s17, 1
  %s20 = smul.addr %s19, 8
  %s21 = scalar_lea.vmem %s0, %s20
  %s22 = sadd.s32 0, 0
  %s23 = smul.u32 2, %s22
  %p24 = scmp.lt.s32.totalorder %s23, 1
  %s25 = scalar_select %p24, %s23, 1
  %s26 = smul.addr %s25, 8
  %s27 = scalar_lea.vmem %s0, %s26
  %s28 = sadd.s32 0, 0
  %s29 = smul.u32 2, %s28
  %p30 = scmp.eq.s32.totalorder 0, 0
  // Predicated region
  $region6: #{generator_adversarial_loss.1} parent=0 // pred_check
    %p31 = pneg %p30
  $region7: #{generator_adversarial_loss.1} parent=0 // pred_check_branch
    %33 = sbr.rel (%p31) target = $region9
  $region8: #{generator_adversarial_loss.1} parent=0 // pred_region
    %34 = vst [vmem:[#allocation2] sm:$0xff] 0.0
  $region9: #{generator_adversarial_loss.1} parent=0 // pred_fallthru
    _
  %v35 = vld [vmem:[%s27] sm:$0xff]
  %v36 = vld [vmem:[%s27 + $0x8] sm:$0xff]
  %v37 = vsub.f32 %v35, 1.0
  %v38 = vsub.f32 %v36, 1.0
  %v39 = vmul.f32 %v37, %v37
  %v40 = vmul.f32 %v38, %v38
  %v41 = vld [vmem:[#allocation2] sm:$0xff]
  %v42 = vadd.f32 %v39, %v40
  %v43 = vadd.f32 %v41, %v42
  %44 = vst [vmem:[#allocation2] sm:$0xff] %v43
  // Predicated region
  $region10: #{generator_adversarial_loss.1} parent=0 // pred_check
    %p45 = pneg %p30
  $region11: #{generator_adversarial_loss.1} parent=0 // pred_check_branch
    %47 = sbr.rel (%p45) target = $region13
  $region12: #{generator_adversarial_loss.1} parent=0 // pred_region
    %v48 = vld [vmem:[#allocation2] sm:$0xff]
    %49 = vst [vmem:[%s1] sm:$0xff] %v48
  $region13: #{generator_adversarial_loss.1} parent=0 // pred_fallthru
    _
  // Predicated region
  $region14: #{generator_adversarial_loss.1} parent=0 // pred_check
    _
  $region15: #{generator_adversarial_loss.1} parent=0 // pred_check_branch
    %51 = sbr.rel (0) target = $region17
  $region16: #{generator_adversarial_loss.1} parent=0 // pred_region
    _
  $region17: #{generator_adversarial_loss.1} parent=0 // pred_fallthru
    _
  // Predicated region
  $region18: #{generator_adversarial_loss.1} parent=0 // pred_check
    _
  $region19: #{generator_adversarial_loss.1} parent=0 // pred_check_branch
    %53 = sbr.rel (0) target = $region21
  $region20: #{generator_adversarial_loss.1} parent=0 // pred_region
    _
  $region21: #{generator_adversarial_loss.1} parent=0 // pred_fallthru
    _

</llo_original>
